<compile_context>
chip_gen: v7x
topology: tpu7x:2x2x1
jax: 0.10.0
libtpu: 0.0.40
codegen_flags: <defaults>
</compile_context>

<pallas_src>
import math

import jax
import jax.numpy as jnp
from jax import lax
from jax.experimental import pallas as pl
from jax.experimental.pallas import tpu as pltpu


def _round_up(v, m):
    return -(-v // m) * m


# ---------------------------------------------------------------------------
# Kernels
# ---------------------------------------------------------------------------

def _chn_attn_kernel_3d(x_ref, w_ref, b_ref, o_ref):
    """Fused path: x (B, C, HW), w (OC, C), b (OC, 1) -> o (B, OC, HW)."""
    x = x_ref[...]
    B = x.shape[0]
    OC, C = w_ref.shape

    # logits[b] = x[b] @ x[b]^T : contract the lane axis of both operands (no transpose).
    logits = lax.dot_general(
        x, x, dimension_numbers=(((2,), (2,)), ((0,), (0,))),
        preferred_element_type=jnp.float32)                       # (B, C, C) f32

    m = jnp.max(logits, axis=-1, keepdims=True)
    e = jnp.exp(logits - m)
    inv = pl.reciprocal(jnp.sum(e, axis=-1, keepdims=True), approx=True)   # EUP slot
    weights = e * inv                                             # (B, C, C) f32

    # Fuse the 1x1 conv: (W @ weights) is tiny; the only big matmul streams x once.
    w_b = jnp.broadcast_to(w_ref[...].astype(jnp.float32)[None], (B, OC, C))
    fused = lax.dot_general(
        w_b, weights, dimension_numbers=(((2,), (1,)), ((0,), (0,))),
        preferred_element_type=jnp.float32)                       # (B, OC, C) f32

    out = lax.dot_general(
        fused.astype(x.dtype), x,
        dimension_numbers=(((2,), (1,)), ((0,), (0,))),
        preferred_element_type=jnp.float32)                       # (B, OC, HW) f32

    o_ref[...] = (out + b_ref[...].astype(jnp.float32)[None]).astype(o_ref.dtype)


def _chn_attn_kernel_2d(x_ref, bdw_ref, mask_ref, b_ref, o_ref):
    """Packed small-C path.

    x_ref   : (B*C, HW)    batch elements packed along the sublane axis (native dtype)
    bdw_ref : (B*OC, B*C)  kron(I_B, W) block-diagonal 1x1-conv weight (f32)
    mask_ref: (B*C, B*C)   1.0 where row/col belong to the same batch element (f32)
    b_ref   : (B*OC, 1)    bias tiled per batch element (f32)
    o_ref   : (B*OC, HW)
    """
    x = x_ref[...]
    gram = lax.dot_general(
        x, x, dimension_numbers=(((1,), (1,)), ((), ())),
        preferred_element_type=jnp.float32)                       # (B*C, B*C) f32

    mask = mask_ref[...]
    logits = jnp.where(mask > 0.5, gram, jnp.float32(-1e30))      # same-batch softmax only
    m = jnp.max(logits, axis=-1, keepdims=True)
    e = jnp.exp(logits - m) * mask
    inv = pl.reciprocal(jnp.sum(e, axis=-1, keepdims=True), approx=True)
    weights = e * inv                                             # block-diagonal

    fused = jnp.dot(bdw_ref[...], weights,
                    preferred_element_type=jnp.float32)           # (B*OC, B*C) block-diag
    out = jnp.dot(fused.astype(x.dtype), x,
                  preferred_element_type=jnp.float32)             # (B*OC, HW) f32
    o_ref[...] = (out + b_ref[...]).astype(o_ref.dtype)


def _gram_fuse_kernel(x_ref, w_ref, m_ref, acc_ref):
    """Two-phase, phase A: accumulate x @ x^T over HW tiles; softmax + W-fusion at the end."""
    k = pl.program_id(1)

    @pl.when(k == 0)
    def _():
        acc_ref[...] = jnp.zeros_like(acc_ref)

    x = x_ref[...]                                                # (1, C, hw_tile)
    acc_ref[...] += lax.dot_general(
        x, x, dimension_numbers=(((2,), (2,)), ((0,), (0,))),
        preferred_element_type=jnp.float32)

    @pl.when(k == pl.num_programs(1) - 1)
    def _():
        logits = acc_ref[...]                                     # (1, C, C)
        mx = jnp.max(logits, axis=-1, keepdims=True)
        e = jnp.exp(logits - mx)
        inv = pl.reciprocal(jnp.sum(e, axis=-1, keepdims=True), approx=True)
        weights = e * inv
        w_b = w_ref[...].astype(jnp.float32)[None]                # (1, OC, C)
        m_ref[...] = lax.dot_general(
            w_b, weights, dimension_numbers=(((2,), (1,)), ((0,), (0,))),
            preferred_element_type=jnp.float32)


def _stream_kernel(m_ref, x_ref, b_ref, o_ref):
    """Two-phase, phase B: out_tile = M @ x_tile + b."""
    x = x_ref[...]                                                # (1, C, hw_tile)
    out = lax.dot_general(
        m_ref[...].astype(x.dtype), x,
        dimension_numbers=(((2,), (1,)), ((0,), (0,))),
        preferred_element_type=jnp.float32)                       # (1, OC, hw_tile)
    o_ref[...] = (out + b_ref[...].astype(jnp.float32)[None]).astype(o_ref.dtype)


# ---------------------------------------------------------------------------
# Chip-aware sizing helpers
# ---------------------------------------------------------------------------

def _chip_info():
    """Return (physical VMEM bytes per TensorCore, TensorCores per chip); safe fallbacks."""
    vmem_bytes, num_tc = 64 * 1024 * 1024, 2          # conservative defaults (v7x-like)
    try:
        kind = jax.devices()[0].device_kind.lower()
    except Exception:
        kind = ""
    if "v7" in kind:
        vmem_bytes, num_tc = 64 * 1024 * 1024, 2
    elif any(t in kind for t in ("v5 lite", "v5e", "v5litepod", "v6")):
        vmem_bytes, num_tc = 128 * 1024 * 1024, 1
    try:
        vmem_bytes = int(pltpu.get_tpu_info().vmem_capacity_bytes)
    except Exception:
        pass
    return vmem_bytes, num_tc


def _vmem_limit_bytes(actual, chip_cap, phys_vmem):
    limit = max(chip_cap, actual * 5 // 4 + 2 * 1024 * 1024)      # block bytes + 25% headroom
    limit = min(limit, phys_vmem * 9 // 10)
    return int(max(limit, 16 * 1024 * 1024))


def _pick_batch_block(n, b_max):
    """Largest block <= b_max with <=12.5% batch padding, else the min-padding block."""
    b_max = max(1, min(b_max, n))
    best, best_work = 1, n
    for b in range(b_max, 0, -1):
        work = _round_up(n, b)
        if work * 8 <= n * 9:
            return b
        if work < best_work:
            best, best_work = b, work
    return best


# ---------------------------------------------------------------------------
# Wrapper
# ---------------------------------------------------------------------------

def s_chn_attention2d(x, conv_w, conv_b, *, vmem_block_budget_bytes=None):
    """x: (N, C, H, W), conv_w: (OC, C, 1, 1), conv_b: (OC,) -> (N, OC, H, W)."""
    N, C, H, W = x.shape
    OC = conv_w.shape[0]
    HW = H * W
    isz = jnp.dtype(x.dtype).itemsize
    sub = max(8, 8 * (4 // max(isz, 1)))              # sublane tile: 8 f32 / 16 bf16 / 32 i8

    # ---- chip-aware VMEM budgeting ------------------------------------------------
    phys_vmem, num_tc = _chip_info()
    if phys_vmem >= 128 * 1024 * 1024:
        chip_cap = 96 * 1024 * 1024                   # v5e/v6e: big blocks, big DMAs
    elif phys_vmem >= 64 * 1024 * 1024:
        chip_cap = 48 * 1024 * 1024                   # v7x: stay well under 64 MiB
    else:
        chip_cap = (phys_vmem * 3) // 4
    sizing_budget = (chip_cap * 4) // 5 if vmem_block_budget_bytes is None \
        else int(vmem_block_budget_bytes)

    HW128 = _round_up(HW, 128)                        # lane-dense output stores
    C_sub, OC_sub = _round_up(C, sub), _round_up(OC, sub)
    C8, OC8 = _round_up(C, 8), _round_up(OC, 8)
    C_lane = _round_up(C, 128)

    w2d = conv_w.reshape(OC, C)
    b2d = conv_b.reshape(OC, 1)

    def bytes_3d(b):
        # double-buffered in/out + f32 out temp + f32 softmax temps + fusion temps + slack
        return b * (2 * C_sub * HW128 * isz + 2 * OC_sub * HW128 * isz
                    + OC8 * HW128 * 4
                    + 3 * C8 * C_lane * 4             # logits, e, weights
                    + 2 * OC8 * C_lane * 4            # w_b, fused
                    + C_sub * HW128 * isz)            # headroom / relayouts

    def bytes_2d(b):
        bc, boc = b * C, b * OC
        bc8, boc8 = _round_up(bc, 8), _round_up(boc, 8)
        bc_l = _round_up(bc, 128)
        return (2 * _round_up(bc, sub) * HW128 * isz
                + 2 * _round_up(boc, sub) * HW128 * isz
                + boc8 * HW128 * 4
                + 5 * bc8 * bc_l * 4                  # gram, logits, e, weights, mask
                + 3 * boc8 * bc_l * 4                 # bdw (buffered) + fused
                + _round_up(bc, sub) * HW128 * isz)   # headroom

    # Minimum batch multiple so the packed-2D block's sublane dims satisfy the (8,128) rule.
    u_in = sub // math.gcd(C, sub)
    u_out = sub // math.gcd(OC, sub)
    unit = (u_in * u_out) // math.gcd(u_in, u_out)

    desired_steps = 4 * num_tc if num_tc > 1 else 3   # >=3-4 steps/core on v7x, 2-4 on v5e/v6e

    if bytes_3d(1) > sizing_budget:
        path = "two_phase"
    elif C * isz < 32 and unit <= 16 and bytes_2d(unit) <= sizing_budget:
        path = "packed2d"
    else:
        path = "fused3d"

    # ---------------------------- path 2: fused 3D ---------------------------------
    if path == "fused3d":
        HW_pad = HW128
        b_vmem = max(1, sizing_budget // bytes_3d(1))
        steps_target = max(1, min(desired_steps, N))
        b_cap = max(1, N // steps_target)
        b_blk = _pick_batch_block(N, min(b_vmem, b_cap, N))
        n_pad = _round_up(N, b_blk)

        x_flat = x.reshape(N, C, HW)
        x_flat = jnp.pad(x_flat, ((0, n_pad - N), (0, 0), (0, HW_pad - HW)))
        vmem_limit = _vmem_limit_bytes(bytes_3d(b_blk), chip_cap, phys_vmem)

        out_flat = pl.pallas_call(
            _chn_attn_kernel_3d,
            out_shape=jax.ShapeDtypeStruct((n_pad, OC, HW_pad), x.dtype),
            grid_spec=pltpu.PrefetchScalarGridSpec(
                num_scalar_prefetch=0,
                grid=(n_pad // b_blk,),
                in_specs=[
                    pl.BlockSpec((b_blk, C, HW_pad), lambda n: (n, 0, 0)),
                    pl.BlockSpec((OC, C), lambda n: (0, 0)),
                    pl.BlockSpec((OC, 1), lambda n: (0, 0)),
                ],
                out_specs=pl.BlockSpec((b_blk, OC, HW_pad), lambda n: (n, 0, 0)),
            ),
            compiler_params=pltpu.CompilerParams(
                dimension_semantics=("parallel",),
                vmem_limit_bytes=vmem_limit),
        )(x_flat, w2d, b2d)
        return out_flat[:N, :, :HW].reshape(N, OC, H, W)

    # ---------------------------- path 1: packed 2D (small C) ----------------------
    if path == "packed2d":
        HW_pad = HW128
        NB = -(-N // unit)
        g_hi = max(1, min(NB, 512 // max(1, unit * max(C, OC))))  # cap block-diag size ~512
        g_vmem = 1
        for g in range(g_hi, 0, -1):
            if bytes_2d(g * unit) <= sizing_budget:
                g_vmem = g
                break
        steps_target = max(1, min(desired_steps, NB))
        g_cap = max(1, NB // steps_target)
        g = _pick_batch_block(NB, min(g_vmem, g_cap, NB))
        b_blk = g * unit
        n_pad = _round_up(N, b_blk)

        x_flat = x.reshape(N, C, HW)
        x_flat = jnp.pad(x_flat, ((0, n_pad - N), (0, 0), (0, HW_pad - HW)))
        x2d = x_flat.reshape(n_pad * C, HW_pad)

        # Block-diagonal conv weight, same-batch softmax mask, tiled bias (all tiny, f32).
        bdw = jnp.kron(jnp.eye(b_blk, dtype=jnp.float32), w2d.astype(jnp.float32))
        mask = jnp.kron(jnp.eye(b_blk, dtype=jnp.float32),
                        jnp.ones((C, C), dtype=jnp.float32))
        bias = jnp.tile(b2d.astype(jnp.float32), (b_blk, 1))

        vmem_limit = _vmem_limit_bytes(bytes_2d(b_blk), chip_cap, phys_vmem)

        out2d = pl.pallas_call(
            _chn_attn_kernel_2d,
            out_shape=jax.ShapeDtypeStruct((n_pad * OC, HW_pad), x.dtype),
            grid_spec=pltpu.PrefetchScalarGridSpec(
                num_scalar_prefetch=0,
                grid=(n_pad // b_blk,),
                in_specs=[
                    pl.BlockSpec((b_blk * C, HW_pad), lambda n: (n, 0)),
                    pl.BlockSpec((b_blk * OC, b_blk * C), lambda n: (0, 0)),
                    pl.BlockSpec((b_blk * C, b_blk * C), lambda n: (0, 0)),
                    pl.BlockSpec((b_blk * OC, 1), lambda n: (0, 0)),
                ],
                out_specs=pl.BlockSpec((b_blk * OC, HW_pad), lambda n: (n, 0)),
            ),
            compiler_params=pltpu.CompilerParams(
                dimension_semantics=("parallel",),
                vmem_limit_bytes=vmem_limit),
        )(x2d, bdw, mask, bias)
        out_flat = out2d.reshape(n_pad, OC, HW_pad)
        return out_flat[:N, :, :HW].reshape(N, OC, H, W)

    # ---------------------------- path 3: two-phase (huge H*W) ---------------------
    per_lane = (2 * C_sub + 2 * OC_sub) * isz + (OC8 + C_sub) * 4
    fixed = (4 * C8 * C_lane + 3 * OC8 * C_lane) * 4
    avail = max(sizing_budget - fixed, per_lane * 128)
    hw_tile = max(128, min((avail // per_lane) // 128 * 128, 32 * 1024, HW128))
    HW_pad = _round_up(HW, hw_tile)
    n_hw = HW_pad // hw_tile

    x_flat = x.reshape(N, C, HW)
    x_flat = jnp.pad(x_flat, ((0, 0), (0, 0), (0, HW_pad - HW)))
    vmem_limit = _vmem_limit_bytes(fixed + per_lane * hw_tile, chip_cap, phys_vmem)

    # Phase A: per-batch fused matrix M = W @ softmax(x x^T), Gram accumulated over HW tiles.
    m_fused = pl.pallas_call(
        _gram_fuse_kernel,
        out_shape=jax.ShapeDtypeStruct((N, OC, C), jnp.float32),
        grid_spec=pltpu.PrefetchScalarGridSpec(
            num_scalar_prefetch=0,
            grid=(N, n_hw),
            in_specs=[
                pl.BlockSpec((1, C, hw_tile), lambda n, k: (n, 0, k)),
                pl.BlockSpec((OC, C), lambda n, k: (0, 0)),
            ],
            out_specs=pl.BlockSpec((1, OC, C), lambda n, k: (n, 0, 0)),
            scratch_shapes=[pltpu.VMEM((1, C, C), jnp.float32)],
        ),
        compiler_params=pltpu.CompilerParams(
            dimension_semantics=("parallel", "arbitrary"),
            vmem_limit_bytes=vmem_limit),
    )(x_flat, w2d)

    # Phase B: stream x tiles, out_tile = M @ x_tile + b; both grid axes parallel.
    out_flat = pl.pallas_call(
        _stream_kernel,
        out_shape=jax.ShapeDtypeStruct((N, OC, HW_pad), x.dtype),
        grid_spec=pltpu.PrefetchScalarGridSpec(
            num_scalar_prefetch=0,
            grid=(N, n_hw),
            in_specs=[
                pl.BlockSpec((1, OC, C), lambda n, k: (n, 0, 0)),
                pl.BlockSpec((1, C, hw_tile), lambda n, k: (n, 0, k)),
                pl.BlockSpec((OC, 1), lambda n, k: (0, 0)),
            ],
            out_specs=pl.BlockSpec((1, OC, hw_tile), lambda n, k: (n, 0, k)),
        ),
        compiler_params=pltpu.CompilerParams(
            dimension_semantics=("parallel", "parallel"),
            vmem_limit_bytes=vmem_limit),
    )(m_fused, x_flat, b2d)
    return out_flat[:, :, :HW].reshape(N, OC, H, W)


# ---------------------------------------------------------------------------
# Reference + tests
# ---------------------------------------------------------------------------

def _reference(x, conv_w, conv_b):
    N, C, H, W = x.shape
    OC = conv_w.shape[0]
    x_hw = x.reshape(N, C, H * W).astype(jnp.float32)
    logits = jnp.einsum("ncp,ndp->ncd", x_hw, x_hw)
    weights = jax.nn.softmax(logits, axis=-1)
    attn = jnp.einsum("ncd,ndp->ncp", weights, x_hw)
    w2d = conv_w.reshape(OC, C).astype(jnp.float32)
    out = jnp.einsum("oc,ncp->nop", w2d, attn) + conv_b.reshape(1, OC, 1).astype(jnp.float32)
    return out.reshape(N, OC, H, W).astype(x.dtype)


def _run_case(name, key, N, C, OC, H, W, **kw):
    k_x, k_w, k_b = jax.random.split(key, 3)
    x = jax.random.normal(k_x, (N, C, H, W), dtype=jnp.float32)
    conv_w = jax.random.normal(k_w, (OC, C, 1, 1), dtype=jnp.float32) / jnp.sqrt(C)
    conv_b = jax.random.normal(k_b, (OC,), dtype=jnp.float32) * 0.01
    out = jax.block_until_ready(s_chn_attention2d(x, conv_w, conv_b, **kw))
    ref = _reference(x, conv_w, conv_b)
    assert out.shape == (N, OC, H, W), (name, out.shape)
    err = float(jnp.max(jnp.abs(out.astype(jnp.float32) - ref.astype(jnp.float32))))
    # approx=True reciprocal (EUP) + matmul reassociation give tiny deltas vs exact softmax.
    assert jnp.allclose(out, ref, atol=5e-3, rtol=5e-3), (name, err)


if __name__ == "__main__":
    root = jax.random.PRNGKey(0)
    k1, k2, k3 = jax.random.split(root, 3)

    # 1) Small-C regime -> packed block-diagonal 2D path.
    _run_case("packed2d", k1, N=2, C=4, OC=8, H=16, W=16)
    # 2) General regime -> fused 3D path (ragged batch, divisor-friendly blocking).
    _run_case("fused3d", k2, N=3, C=16, OC=8, H=8, W=8)
    # 3) Tiny VMEM budget forces the two-phase large-H*W split (Gram accumulated over tiles).
    _run_case("two_phase", k3, N=2, C=4, OC=8, H=32, W=32,
              vmem_block_budget_bytes=128 * 1024)

    print("KERNEL_OK")
</pallas_src>

<mosaic_0001>
module attributes {stable_mosaic.version = 11 : i64} {
  func.func @_chn_attn_kernel_2d(%arg0: i32, %arg1: memref<8x256xf32, #tpu.memory_space<vmem>>, %arg2: memref<16x8xf32, #tpu.memory_space<vmem>>, %arg3: memref<8x8xf32, #tpu.memory_space<vmem>>, %arg4: memref<16x1xf32, #tpu.memory_space<vmem>>, %arg5: memref<16x256xf32, #tpu.memory_space<vmem>>) attributes {dimension_semantics = [#tpu.dimension_semantics<parallel>], iteration_bounds = array<i64: 1>, scalar_prefetch = 0 : i64, scratch_operands = 0 : i64, tpu.core_type = #tpu.core_type<tc>, window_params = [{transform_indices = @transform_0, window_bounds = array<i64: 8, 256>}, {pipeline_mode = #tpu.pipeline_mode<synchronous>, transform_indices = @transform_1, window_bounds = array<i64: 16, 8>}, {pipeline_mode = #tpu.pipeline_mode<synchronous>, transform_indices = @transform_2, window_bounds = array<i64: 8, 8>}, {pipeline_mode = #tpu.pipeline_mode<synchronous>, transform_indices = @transform_3, window_bounds = array<i64: 16, 1>}, {transform_indices = @transform_4, window_bounds = array<i64: 16, 256>}]} {
    %c0 = arith.constant 0 : index
    %c0_0 = arith.constant 0 : index
    %0 = vector.load %arg1[%c0, %c0_0] : memref<8x256xf32, #tpu.memory_space<vmem>>, vector<8x256xf32>
    %cst = arith.constant dense<0.000000e+00> : vector<8x8xf32>
    %1 = tpu.matmul %0, %0, %cst {dimension_numbers = #tpu.dot_dimension_numbers<[1], [1], [0], [0], [0, 0, 1, 0], [], []>} : vector<8x256xf32>, vector<8x256xf32>, vector<8x8xf32> -> vector<8x8xf32>
    %c0_1 = arith.constant 0 : index
    %c0_2 = arith.constant 0 : index
    %2 = vector.load %arg3[%c0_1, %c0_2] : memref<8x8xf32, #tpu.memory_space<vmem>>, vector<8x8xf32>
    %cst_3 = arith.constant 5.000000e-01 : f32
    %3 = vector.broadcast %cst_3 : f32 to vector<8x8xf32>
    %4 = arith.cmpf ogt, %2, %3 : vector<8x8xf32>
    %cst_4 = arith.constant -1.000000e+30 : f32
    %5 = vector.broadcast %cst_4 : f32 to vector<8x8xf32>
    %6 = arith.select %4, %1, %5 : vector<8x8xi1>, vector<8x8xf32>
    %cst_5 = arith.constant dense<0xFF800000> : vector<8xf32>
    %7 = vector.multi_reduction <maximumf>, %6, %cst_5 [1] : vector<8x8xf32> to vector<8xf32>
    %8 = vector.shape_cast %7 : vector<8xf32> to vector<8x1xf32>
    %9 = vector.broadcast %8 : vector<8x1xf32> to vector<8x8xf32>
    %10 = arith.subf %6, %9 : vector<8x8xf32>
    %11 = math.exp %10 : vector<8x8xf32>
    %12 = arith.mulf %11, %2 : vector<8x8xf32>
    %cst_6 = arith.constant dense<0.000000e+00> : vector<8xf32>
    %13 = vector.multi_reduction <add>, %12, %cst_6 [1] : vector<8x8xf32> to vector<8xf32>
    %14 = vector.shape_cast %13 : vector<8xf32> to vector<8x1xf32>
    %15 = tpu.reciprocal %14 {approx = true} : vector<8x1xf32> -> vector<8x1xf32>
    %16 = vector.broadcast %15 : vector<8x1xf32> to vector<8x8xf32>
    %17 = arith.mulf %12, %16 : vector<8x8xf32>
    %c0_7 = arith.constant 0 : index
    %c0_8 = arith.constant 0 : index
    %18 = vector.load %arg2[%c0_7, %c0_8] : memref<16x8xf32, #tpu.memory_space<vmem>>, vector<16x8xf32>
    %cst_9 = arith.constant dense<0.000000e+00> : vector<16x8xf32>
    %19 = tpu.matmul %18, %17, %cst_9 {dimension_numbers = #tpu.dot_dimension_numbers<[1], [0], [0], [1], [0, 0, 1, 1], [], []>} : vector<16x8xf32>, vector<8x8xf32>, vector<16x8xf32> -> vector<16x8xf32>
    %cst_10 = arith.constant dense<0.000000e+00> : vector<16x256xf32>
    %20 = tpu.matmul %19, %0, %cst_10 {dimension_numbers = #tpu.dot_dimension_numbers<[1], [0], [0], [1], [0, 0, 1, 1], [], []>} : vector<16x8xf32>, vector<8x256xf32>, vector<16x256xf32> -> vector<16x256xf32>
    %c0_11 = arith.constant 0 : index
    %c0_12 = arith.constant 0 : index
    %21 = vector.load %arg4[%c0_11, %c0_12] : memref<16x1xf32, #tpu.memory_space<vmem>>, vector<16x1xf32>
    %22 = vector.broadcast %21 : vector<16x1xf32> to vector<16x256xf32>
    %23 = arith.addf %20, %22 : vector<16x256xf32>
    %c0_13 = arith.constant 0 : index
    %c0_14 = arith.constant 0 : index
    %24 = vector.load %arg5[%c0_13, %c0_14] : memref<16x256xf32, #tpu.memory_space<vmem>>, vector<16x256xf32>
    tpu.vector_store %arg5[%c0_13, %c0_14], %23 {strides = array<i32>} : memref<16x256xf32, #tpu.memory_space<vmem>>, vector<16x256xf32>,
    return
  }
  func.func @transform_0(%arg0: i32) -> (i32, i32) {
    %c0_i32 = arith.constant 0 : i32
    %c0_i32_0 = arith.constant 0 : i32
    return %arg0, %c0_i32 : i32, i32
  }
  func.func @transform_1(%arg0: i32) -> (i32, i32) {
    %c0_i32 = arith.constant 0 : i32
    %c0_i32_0 = arith.constant 0 : i32
    %c0_i32_1 = arith.constant 0 : i32
    return %c0_i32, %c0_i32_0 : i32, i32
  }
  func.func @transform_2(%arg0: i32) -> (i32, i32) {
    %c0_i32 = arith.constant 0 : i32
    %c0_i32_0 = arith.constant 0 : i32
    %c0_i32_1 = arith.constant 0 : i32
    return %c0_i32, %c0_i32_0 : i32, i32
  }
  func.func @transform_3(%arg0: i32) -> (i32, i32) {
    %c0_i32 = arith.constant 0 : i32
    %c0_i32_0 = arith.constant 0 : i32
    %c0_i32_1 = arith.constant 0 : i32
    return %c0_i32, %c0_i32_0 : i32, i32
  }
  func.func @transform_4(%arg0: i32) -> (i32, i32) {
    %c0_i32 = arith.constant 0 : i32
    %c0_i32_0 = arith.constant 0 : i32
    return %arg0, %c0_i32 : i32, i32
  }
}

</mosaic_0001>

<llo_original>
// kernel: tpu_custom_call.1
$region0: #{tpu_custom_call.1}
  #allocation0 [shape = 'u32[]', space=smem, size = 0x4, offset = 0x4, fixed_abs, tag = 'smem constant byte address 0x4 - core index']
  #allocation1 [shape = 'u32[144,128]{1,0:T(1,128)}', space=vmem, size = 0x12000, scoped, tag = 'internal scratch']
  %s0 = inlined_call_operand.vmem [shape: f32[8,256], index: 0, kind: input, shape index: {}]
  %s1 = inlined_call_operand.vmem [shape: f32[16,8], index: 1, kind: input, shape index: {}]
  %s2 = inlined_call_operand.vmem [shape: f32[8,8], index: 2, kind: input, shape index: {}]
  %s3 = inlined_call_operand.vmem [shape: f32[16,1], index: 3, kind: input, shape index: {}]
  %s4 = inlined_call_operand.hbm [shape: f32[16,256], index: 4, kind: output, shape index: {}]
  %s5 = sld [smem:[#allocation0]]
  $region26: #{tpu_custom_call.1} parent=0
    _
  %s7 = ssub.s32 1, %s5
  %s8 = scalar_select 0, %s7, %s5
  $region1: #{tpu_custom_call.1} parent=0
    #allocation2 [shape = 'u8[16384]{0}', space=vmem, size = 0x4000, scoped, tag = 'output window, operand 0, single buffered']
    #allocation3 [shape = 's32[1]{0}', space=sflag, size = 0x4, scoped, tag = 'scoped memory for tpu_custom_call.1']
    %9 = vsyncpa [#allocation3], 0
    // Predicated region
    $region2: #{tpu_custom_call.1} parent=1 // pred_check
      _
    $region3: #{tpu_custom_call.1} parent=1 // pred_check_branch
      %11 = sbr.rel (0) target = $region5
    $region4: #{tpu_custom_call.1} parent=1 // pred_region
      _
    $region5: #{tpu_custom_call.1} parent=1 // pred_fallthru
      _
    // Predicated region
    $region6: #{tpu_custom_call.1} parent=1 // pred_check
      _
    $region7: #{tpu_custom_call.1} parent=1 // pred_check_branch
      %13 = sbr.rel (0) target = $region9
    $region8: #{tpu_custom_call.1} parent=1 // pred_region
      _
    $region9: #{tpu_custom_call.1} parent=1 // pred_fallthru
      _
    // Predicated region
    $region10: #{tpu_custom_call.1} parent=1 // pred_check
      _
    $region11: #{tpu_custom_call.1} parent=1 // pred_check_branch
      %15 = sbr.rel (0) target = $region13
    $region12: #{tpu_custom_call.1} parent=1 // pred_region
      _
    $region13: #{tpu_custom_call.1} parent=1 // pred_fallthru
      _
    // Predicated region
    $region14: #{tpu_custom_call.1} parent=1 // pred_check
      _
    $region15: #{tpu_custom_call.1} parent=1 // pred_check_branch
      %17 = sbr.rel (0) target = $region17
    $region16: #{tpu_custom_call.1} parent=1 // pred_region
      _
    $region17: #{tpu_custom_call.1} parent=1 // pred_fallthru
      _
    %v18 = vld [vmem:[%s0] sm:$0xff]
    %v19 = vld [vmem:[%s0 + $0x8] sm:$0xff]
    %20 = vmatprep.subr.mxu0 %v19
    %21 = vmatpush1.xpose.msra.mxu0 %v18
    %22 = vmatprep.subr.mxu0 0.0
    %23 = vmatpush1.xpose.msra.mxu0 0.0
    %24 = vmatprep.subr.mxu0 0.0
    %25 = vmatpush1.xpose.msra.mxu0 0.0
    %26 = vmatprep.subr.mxu0 0.0
    %27 = vmatpush1.xpose.msra.mxu0 0.0
    %28 = vmatprep.subr.mxu0 0.0
    %29 = vmatpush1.xpose.msra.mxu0 0.0
    %30 = vmatprep.subr.mxu0 0.0
    %31 = vmatpush1.xpose.msra.mxu0 0.0
    %32 = vmatprep.subr.mxu0 0.0
    %33 = vmatpush1.xpose.msra.mxu0 0.0
    %34 = vmatprep.subr.mxu0 0.0
    %35 = vmatpush1.xpose.msra.mxu0 0.0
    %36 = vmatprep.subr.mxu0 0.0
    %37 = vmatpush1.xpose.msra.mxu0 0.0
    %38 = vmatprep.subr.mxu0 0.0
    %39 = vmatpush1.xpose.msra.mxu0 0.0
    %40 = vmatprep.subr.mxu0 0.0
    %41 = vmatpush1.xpose.msra.mxu0 0.0
    %42 = vmatprep.subr.mxu0 0.0
    %43 = vmatpush1.xpose.msra.mxu0 0.0
    %44 = vmatprep.subr.mxu0 0.0
    %45 = vmatpush1.xpose.msra.mxu0 0.0
    %46 = vmatprep.subr.mxu0 0.0
    %47 = vmatpush1.xpose.msra.mxu0 0.0
    %48 = vmatprep.subr.mxu0 0.0
    %49 = vmatpush1.xpose.msra.mxu0 0.0
    %50 = vmatprep.subr.mxu0 0.0
    %51 = vmatpush1.xpose.msra.mxu0 0.0
    %52 = vmatprep.subr.mxu0 0.0
    %53 = vmatpush1.xpose.msra.mxu0 0.0
    %54 = vmatprep.subr.mxu0 0.0
    %55 = vmatpush1.xpose.msra.mxu0 0.0
    %56 = vmatprep.subr.mxu0 0.0
    %57 = vmatpush1.xpose.msra.mxu0 0.0
    %58 = vmatprep.subr.mxu0 0.0
    %59 = vmatpush1.xpose.msra.mxu0 0.0
    %60 = vmatprep.subr.mxu0 0.0
    %61 = vmatpush1.xpose.msra.mxu0 0.0
    %62 = vmatprep.subr.mxu0 0.0
    %63 = vmatpush1.xpose.msra.mxu0 0.0
    %64 = vmatprep.subr.mxu0 0.0
    %65 = vmatpush1.xpose.msra.mxu0 0.0
    %66 = vmatprep.subr.mxu0 0.0
    %67 = vmatpush1.xpose.msra.mxu0 0.0
    %68 = vmatprep.subr.mxu0 0.0
    %69 = vmatpush1.xpose.msra.mxu0 0.0
    %70 = vmatprep.subr.mxu0 0.0
    %71 = vmatpush1.xpose.msra.mxu0 0.0
    %72 = vmatprep.subr.mxu0 0.0
    %73 = vmatpush1.xpose.msra.mxu0 0.0
    %74 = vmatprep.subr.mxu0 0.0
    %75 = vmatpush1.xpose.msra.mxu0 0.0
    %76 = vmatprep.subr.mxu0 0.0
    %77 = vmatpush1.xpose.msra.mxu0 0.0
    %78 = vmatprep.subr.mxu0 0.0
    %79 = vmatpush1.xpose.msra.mxu0 0.0
    %80 = vmatprep.subr.mxu0 0.0
    %81 = vmatpush1.xpose.msra.mxu0 0.0
    %82 = vmatprep.subr.mxu0 0.0
    %83 = vmatpush1.xpose.msra.mxu0 0.0
    %84 = vmatprep.mubr.f32.mxu0 %v19
    %85 = vmatmul.mubr.f32.gmra.mrb[0].mxu0 %v18
    %v86 = vpop.f32.mrb[0].mxu0
    %v87 = vadd.f32 0.0, %v86
    %v88 = vpop.f32.mrb[0].mxu0
    %89 = vdwg.mxu0
    %v90 = vld [vmem:[%s2] sm:$0xff]
    %vm91 = vcmp.gt.f32.partialorder %v90, 0.5
    %v92 = vsel %vm91, %v87, -1e+30
    %vm93 = vcmask 64512
    %v94 = vsel %vm93, %v92, -inf
    %95 = vmax.xlane.f32.xlu0 %v94
    %v96 = vpop.xlane.xlu0 %95
    %v97 = vsub.f32 %v92, %v96
    %v98 = vmul.f32 %v97, 1.442695
    %v99 = vpow.pop %v98
    %v100 = vmul.f32 %v99, %v90
    %v101 = vsel %vm93, %v100, 0.0
    %102 = vadd.xlane.f32.xlu0 %v101
    %v103 = vpop.xlane.xlu0 %102
    %v104 = vrcp.pop %v103
    %v105 = vmul.f32 %v100, %v104
    %v106 = vld [vmem:[%s1] sm:$0xff]
    %v107 = vld [vmem:[%s1 + $0x8] sm:$0xff]
    %v109 = vsel %vm93, %v106, 0
    %v112 = vsel %vm93, %v107, 0
    %114 = vmatprep.subr.mxu0 0.0
    %115 = vmatpush1.msra.mxu0 %v105
    %116 = vmatprep.subr.mxu0 0.0
    %117 = vmatpush1.msra.mxu0 0.0
    %118 = vmatprep.subr.mxu0 0.0
    %119 = vmatpush1.msra.mxu0 0.0
    %120 = vmatprep.subr.mxu0 0.0
    %121 = vmatpush1.msra.mxu0 0.0
    %122 = vmatprep.subr.mxu0 0.0
    %123 = vmatpush1.msra.mxu0 0.0
    %124 = vmatprep.subr.mxu0 0.0
    %125 = vmatpush1.msra.mxu0 0.0
    %126 = vmatprep.subr.mxu0 0.0
    %127 = vmatpush1.msra.mxu0 0.0
    %128 = vmatprep.subr.mxu0 0.0
    %129 = vmatpush1.msra.mxu0 0.0
    %130 = vmatprep.subr.mxu0 0.0
    %131 = vmatpush1.msra.mxu0 0.0
    %132 = vmatprep.subr.mxu0 0.0
    %133 = vmatpush1.msra.mxu0 0.0
    %134 = vmatprep.subr.mxu0 0.0
    %135 = vmatpush1.msra.mxu0 0.0
    %136 = vmatprep.subr.mxu0 0.0
    %137 = vmatpush1.msra.mxu0 0.0
    %138 = vmatprep.subr.mxu0 0.0
    %139 = vmatpush1.msra.mxu0 0.0
    %140 = vmatprep.subr.mxu0 0.0
    %141 = vmatpush1.msra.mxu0 0.0
    %142 = vmatprep.subr.mxu0 0.0
    %143 = vmatpush1.msra.mxu0 0.0
    %144 = vmatprep.subr.mxu0 0.0
    %145 = vmatpush1.msra.mxu0 0.0
    %146 = vmatprep.subr.mxu0 0.0
    %147 = vmatpush1.msra.mxu0 0.0
    %148 = vmatprep.subr.mxu0 0.0
    %149 = vmatpush1.msra.mxu0 0.0
    %150 = vmatprep.subr.mxu0 0.0
    %151 = vmatpush1.msra.mxu0 0.0
    %152 = vmatprep.subr.mxu0 0.0
    %153 = vmatpush1.msra.mxu0 0.0
    %154 = vmatprep.subr.mxu0 0.0
    %155 = vmatpush1.msra.mxu0 0.0
    %156 = vmatprep.subr.mxu0 0.0
    %157 = vmatpush1.msra.mxu0 0.0
    %158 = vmatprep.subr.mxu0 0.0
    %159 = vmatpush1.msra.mxu0 0.0
    %160 = vmatprep.subr.mxu0 0.0
    %161 = vmatpush1.msra.mxu0 0.0
    %162 = vmatprep.subr.mxu0 0.0
    %163 = vmatpush1.msra.mxu0 0.0
    %164 = vmatprep.subr.mxu0 0.0
    %165 = vmatpush1.msra.mxu0 0.0
    %166 = vmatprep.subr.mxu0 0.0
    %167 = vmatpush1.msra.mxu0 0.0
    %168 = vmatprep.subr.mxu0 0.0
    %169 = vmatpush1.msra.mxu0 0.0
    %170 = vmatprep.subr.mxu0 0.0
    %171 = vmatpush1.msra.mxu0 0.0
    %172 = vmatprep.subr.mxu0 0.0
    %173 = vmatpush1.msra.mxu0 0.0
    %174 = vmatprep.subr.mxu0 0.0
    %175 = vmatpush1.msra.mxu0 0.0
    %176 = vmatprep.subr.mxu0 0.0
    %177 = vmatpush1.msra.mxu0 0.0
    %178 = vmatprep.mubr.f32.mxu0 0.0
    %179 = vmatmul.mubr.f32.gmra.mrb[0].mxu0 %v109
    %v180 = vpop.f32.mrb[0].mxu0
    %v181 = vadd.f32 0.0, %v180
    %v182 = vpop.f32.mrb[0].mxu0
    %183 = vmatprep.mubr.f32.mxu0 0.0
    %184 = vmatmul.mubr.f32.gmra.mrb[0].mxu0 %v112
    %v185 = vpop.f32.mrb[0].mxu0
    %v186 = vadd.f32 0.0, %v185
    %v187 = vpop.f32.mrb[0].mxu0
    %188 = vdwg.mxu0
    %v189 = vld [vmem:[%s3] sm:$0xff]
    %v190 = vld [vmem:[%s3 + $0x8] sm:$0xff]
    %192 = vset.pattern.permute.xlu0 0
    %193 = vperm.xlu0 %192, %v189
    %v194 = vpop.permute.xlu0 %193
    %197 = vset.pattern.permute.xlu0 0
    %198 = vperm.xlu0 %197, %v190
    %v199 = vpop.permute.xlu0 %198
    %v202 = vsel %vm93, %v181, 0
    %v205 = vsel %vm93, %v186, 0
    %207 = vmatprep.subr.mxu0 %v19
    %208 = vmatpush1.msra.mxu0 %v18
    %209 = vmatprep.subr.mxu0 0.0
    %210 = vmatpush1.msra.mxu0 0.0
    %211 = vmatprep.subr.mxu0 0.0
    %212 = vmatpush1.msra.mxu0 0.0
    %213 = vmatprep.subr.mxu0 0.0
    %214 = vmatpush1.msra.mxu0 0.0
    %215 = vmatprep.subr.mxu0 0.0
    %216 = vmatpush1.msra.mxu0 0.0
    %217 = vmatprep.subr.mxu0 0.0
    %218 = vmatpush1.msra.mxu0 0.0
    %219 = vmatprep.subr.mxu0 0.0
    %220 = vmatpush1.msra.mxu0 0.0
    %221 = vmatprep.subr.mxu0 0.0
    %222 = vmatpush1.msra.mxu0 0.0
    %223 = vmatprep.subr.mxu0 0.0
    %224 = vmatpush1.msra.mxu0 0.0
    %225 = vmatprep.subr.mxu0 0.0
    %226 = vmatpush1.msra.mxu0 0.0
    %227 = vmatprep.subr.mxu0 0.0
    %228 = vmatpush1.msra.mxu0 0.0
    %229 = vmatprep.subr.mxu0 0.0
    %230 = vmatpush1.msra.mxu0 0.0
    %231 = vmatprep.subr.mxu0 0.0
    %232 = vmatpush1.msra.mxu0 0.0
    %233 = vmatprep.subr.mxu0 0.0
    %234 = vmatpush1.msra.mxu0 0.0
    %235 = vmatprep.subr.mxu0 0.0
    %236 = vmatpush1.msra.mxu0 0.0
    %237 = vmatprep.subr.mxu0 0.0
    %238 = vmatpush1.msra.mxu0 0.0
    %239 = vmatprep.subr.mxu0 0.0
    %240 = vmatpush1.msra.mxu0 0.0
    %241 = vmatprep.subr.mxu0 0.0
    %242 = vmatpush1.msra.mxu0 0.0
    %243 = vmatprep.subr.mxu0 0.0
    %244 = vmatpush1.msra.mxu0 0.0
    %245 = vmatprep.subr.mxu0 0.0
    %246 = vmatpush1.msra.mxu0 0.0
    %247 = vmatprep.subr.mxu0 0.0
    %248 = vmatpush1.msra.mxu0 0.0
    %249 = vmatprep.subr.mxu0 0.0
    %250 = vmatpush1.msra.mxu0 0.0
    %251 = vmatprep.subr.mxu0 0.0
    %252 = vmatpush1.msra.mxu0 0.0
    %253 = vmatprep.subr.mxu0 0.0
    %254 = vmatpush1.msra.mxu0 0.0
    %255 = vmatprep.subr.mxu0 0.0
    %256 = vmatpush1.msra.mxu0 0.0
    %257 = vmatprep.subr.mxu0 0.0
    %258 = vmatpush1.msra.mxu0 0.0
    %259 = vmatprep.subr.mxu0 0.0
    %260 = vmatpush1.msra.mxu0 0.0
    %261 = vmatprep.subr.mxu0 0.0
    %262 = vmatpush1.msra.mxu0 0.0
    %263 = vmatprep.subr.mxu0 0.0
    %264 = vmatpush1.msra.mxu0 0.0
    %265 = vmatprep.subr.mxu0 0.0
    %266 = vmatpush1.msra.mxu0 0.0
    %267 = vmatprep.subr.mxu0 0.0
    %268 = vmatpush1.msra.mxu0 0.0
    %269 = vmatprep.subr.mxu0 0.0
    %270 = vmatpush1.msra.mxu0 0.0
    %271 = vmatprep.mubr.f32.mxu0 0.0
    %272 = vmatmul.mubr.f32.gmra.mrb[0].mxu0 %v202
    %v273 = vpop.f32.mrb[0].mxu0
    %v274 = vadd.f32 %v194, %v273
    %v275 = vpop.f32.mrb[0].mxu0
    %v276 = vadd.f32 %v194, %v275
    %277 = vmatprep.mubr.f32.mxu0 0.0
    %278 = vmatmul.mubr.f32.gmra.mrb[0].mxu0 %v205
    %v279 = vpop.f32.mrb[0].mxu0
    %v280 = vadd.f32 %v199, %v279
    %v281 = vpop.f32.mrb[0].mxu0
    %v282 = vadd.f32 %v199, %v281
    %283 = vdwg.mxu0
    %284 = vst [vmem:[#allocation2] sm:$0xff] %v274
    %285 = vst [vmem:[#allocation2 + $0x8] sm:$0xff] %v276
    %286 = vst [vmem:[#allocation2 + $0x10] sm:$0xff] %v280
    %287 = vst [vmem:[#allocation2 + $0x18] sm:$0xff] %v282
    // Predicated region
    $region18: #{tpu_custom_call.1} parent=1 // pred_check
      _
    $region19: #{tpu_custom_call.1} parent=1 // pred_check_branch
      %289 = sbr.rel (0) target = $region21
    $region20: #{tpu_custom_call.1} parent=1 // pred_region
      %s291 = ssub.s32 512, 512
      %292 = vsyncadd [#allocation3], %s291
      %s293 = sshll.u32 [#allocation2], 4
      %s294 = int_to_ptr.vmem [resolvable:$true] %s293
      %299 = dma.vmem_to_hbm [thread:$0]  %s294, 512, %s4, [#allocation3], 256, 256, 16
    $region21: #{tpu_custom_call.1} parent=1 // pred_fallthru
      _
    // Predicated region
    $region22: #{tpu_custom_call.1} parent=1 // pred_check
      _
    $region23: #{tpu_custom_call.1} parent=1 // pred_check_branch
      %301 = sbr.rel (0) target = $region25
    $region24: #{tpu_custom_call.1} parent=1 // pred_region
      %302 = dma.done [#allocation3], 512
    $region25: #{tpu_custom_call.1} parent=1 // pred_fallthru
      _
    %303 = vsyncpa [#allocation3], 1

</llo_original>
